<compile_context>
chip_gen: v6e
topology: v6e:2x2x1
jax: 0.10.0
libtpu: 0.0.40
codegen_flags: <defaults>
</compile_context>

<pallas_src>
import jax
import jax.numpy as jnp
from jax.experimental import pallas as pl
from jax.experimental.pallas import tpu as pltpu


def _round_up(a, m):
    return (a + m - 1) // m * m


def _vmem_limit_bytes():
    """~75% of physical VMEM (48 MiB on v7x, 96 MiB on v5e/v6e); safe fallback."""
    try:
        cap = pltpu.get_tpu_info().vmem_capacity_bytes
        return int(min((3 * cap) // 4, 96 << 20))
    except Exception:
        return 48 << 20  # safe on every generation (v7x physical VMEM = 64 MiB)


def _choose_tm(batch):
    """Batch-tile rows: big (<=512) tiles, >=2 grid steps when batch allows (megacore)."""
    if batch <= 128:
        return _round_up(batch, 8)                          # single small tile
    if batch <= 1024:
        return max(128, _round_up(pl.cdiv(batch, 2), 8))    # ~2 tiles for v7x's 2 TCs
    return 512                                              # large batch: 512-row tiles


def mlp2_kernel(x_ref, w1_ref, b1_ref, w2_ref, b2_ref, o_ref):
    # First matmul: (tm, in) @ (in, hidden) on the MXU, f32 accumulate.
    x = x_ref[...].astype(w1_ref.dtype)
    h = jnp.dot(x, w1_ref[...], preferred_element_type=jnp.float32)
    # Bias add + ReLU in f32 on the VPU (rides in free VALU slots).
    h = jnp.maximum(h + b1_ref[...], 0.0)
    # Second matmul: (tm, hidden) @ (hidden, n_pad); cast is a no-op when W2 is f32.
    out = jnp.dot(h.astype(w2_ref.dtype), w2_ref[...],
                  preferred_element_type=jnp.float32) + b2_ref[...]
    o_ref[...] = out.astype(o_ref.dtype)


def make_top_mlp2(w1_t, b1, w2_t, b2, *, use_bf16_matmul=True, out_dtype=None,
                  x_buffers=2):
    """Build TopMLP2 forward: relu(x @ W1^T + b1) @ W2^T + b2.

    w1_t: (in_size, hidden)      (= torch l1.weight.T)
    b1:   (hidden,)
    w2_t: (hidden, cnt_classes)  (= torch l2.weight.T)
    b2:   (cnt_classes,)

    Weight prep (pad / cast / reshape) happens once here, not per call.
    Returns forward(x) with x: (B, in_size).
    """
    in_size, hidden = w1_t.shape
    cnt_classes = w2_t.shape[1]
    # Lane-dense output / real MXU N dimension: pad classes to a multiple of 128
    # with zero columns (padded logits are exactly 0, sliced off after the call).
    n_pad = _round_up(cnt_classes, 128)

    w_dtype = jnp.bfloat16 if use_bf16_matmul else w1_t.dtype
    w1_k = w1_t.astype(w_dtype)
    w2_k = jnp.pad(w2_t, ((0, 0), (0, n_pad - cnt_classes))).astype(w_dtype)
    b1_k = b1.reshape(1, hidden).astype(jnp.float32)
    b2_k = jnp.pad(b2, ((0, n_pad - cnt_classes),)).reshape(1, n_pad).astype(jnp.float32)

    # Grid-invariant operands: single-buffered (saves VMEM, esp. on v7x's 64 MiB).
    weight_mode = pl.Buffered(1)
    x_mode = pl.Buffered(x_buffers)   # deepen (e.g. 3) on v5e if DMA is exposed

    def _forward(x, w1, b1r, w2, b2r):
        batch = x.shape[0]
        tm = _choose_tm(batch)
        grid = (pl.cdiv(batch, tm),)   # ragged last tile: Pallas masks the partial store
        odt = out_dtype if out_dtype is not None else x.dtype

        out = pl.pallas_call(
            mlp2_kernel,
            out_shape=jax.ShapeDtypeStruct((batch, n_pad), odt),
            grid_spec=pltpu.PrefetchScalarGridSpec(
                num_scalar_prefetch=0,
                grid=grid,
                in_specs=[
                    pl.BlockSpec((tm, in_size), lambda i: (i, 0),
                                 pipeline_mode=x_mode),                   # streamed x tile
                    pl.BlockSpec((in_size, hidden), lambda i: (0, 0),
                                 pipeline_mode=weight_mode),              # W1 (VMEM-resident)
                    pl.BlockSpec((1, hidden), lambda i: (0, 0),
                                 pipeline_mode=weight_mode),              # b1
                    pl.BlockSpec((hidden, n_pad), lambda i: (0, 0),
                                 pipeline_mode=weight_mode),              # W2 (VMEM-resident)
                    pl.BlockSpec((1, n_pad), lambda i: (0, 0),
                                 pipeline_mode=weight_mode),              # b2
                ],
                out_specs=pl.BlockSpec((tm, n_pad), lambda i: (i, 0)),
            ),
            compiler_params=pltpu.CompilerParams(
                dimension_semantics=("parallel",),    # batch tiles shard across TCs (v7x)
                vmem_limit_bytes=_vmem_limit_bytes(),
            ),
        )(x, w1, b1r, w2, b2r)

        # Strip the zero class-padding columns.
        return out[:, :cnt_classes] if n_pad != cnt_classes else out

    fwd = jax.jit(_forward)

    def forward(x):
        return fwd(x, w1_k, b1_k, w2_k, b2_k)

    return forward


def reference_mlp2(x, w1_t, b1, w2_t, b2, *, use_bf16_matmul=True):
    cdt = jnp.bfloat16 if use_bf16_matmul else x.dtype
    h = jnp.dot(x.astype(cdt), w1_t.astype(cdt),
                preferred_element_type=jnp.float32) + b1
    h = jnp.maximum(h, 0.0)
    out = jnp.dot(h.astype(cdt), w2_t.astype(cdt),
                  preferred_element_type=jnp.float32) + b2
    return out.astype(x.dtype)


if __name__ == "__main__":
    # Small shapes consistent with TopMLP2(in_size, hidden_size, cnt_classes).
    B, in_size, hidden, cnt_classes = 16, 128, 128, 3

    key = jax.random.PRNGKey(0)
    kx, kw1, kb1, kw2, kb2, kx2 = jax.random.split(key, 6)

    x = jax.random.normal(kx, (B, in_size), dtype=jnp.float32)

    # PyTorch Linear stores (out, in); parameters kept pre-transposed to (in, out).
    w1_t = jax.random.normal(kw1, (in_size, hidden), dtype=jnp.float32) * 0.05
    b1 = jax.random.normal(kb1, (hidden,), dtype=jnp.float32) * 0.05
    w2_t = jax.random.normal(kw2, (hidden, cnt_classes), dtype=jnp.float32) * 0.05
    b2 = jax.random.normal(kb2, (cnt_classes,), dtype=jnp.float32) * 0.05

    mlp = make_top_mlp2(w1_t, b1, w2_t, b2, use_bf16_matmul=True)

    out = jax.block_until_ready(mlp(x))
    assert out.shape == (B, cnt_classes)
    assert out.dtype == x.dtype

    # Compare against an XLA reference using the same bf16-in / f32-accumulate plan.
    ref = reference_mlp2(x, w1_t, b1, w2_t, b2, use_bf16_matmul=True)
    assert jnp.allclose(out, ref, atol=1e-3, rtol=1e-3), "mismatch vs bf16 reference"

    # Sanity check against the pure-f32 math of the original module (loose tol for bf16 MXU).
    ref_f32 = reference_mlp2(x, w1_t, b1, w2_t, b2, use_bf16_matmul=False)
    assert jnp.allclose(out, ref_f32, atol=3e-2, rtol=3e-2), "mismatch vs f32 reference"

    # Exercise the multi-tile + ragged-last-tile path (grid=(2,), partial final tile).
    B2 = 200
    x2 = jax.random.normal(kx2, (B2, in_size), dtype=jnp.float32)
    out2 = jax.block_until_ready(mlp(x2))
    assert out2.shape == (B2, cnt_classes)
    ref2 = reference_mlp2(x2, w1_t, b1, w2_t, b2, use_bf16_matmul=True)
    assert jnp.allclose(out2, ref2, atol=1e-3, rtol=1e-3), "mismatch on ragged batch"

    print("KERNEL_OK")
</pallas_src>

<mosaic_0001>
module attributes {stable_mosaic.version = 11 : i64} {
  func.func @mlp2_kernel(%arg0: i32, %arg1: memref<16x128xf32, #tpu.memory_space<vmem>>, %arg2: memref<128x128xbf16, #tpu.memory_space<vmem>>, %arg3: memref<1x128xf32, #tpu.memory_space<vmem>>, %arg4: memref<128x128xbf16, #tpu.memory_space<vmem>>, %arg5: memref<1x128xf32, #tpu.memory_space<vmem>>, %arg6: memref<16x128xf32, #tpu.memory_space<vmem>>) attributes {dimension_semantics = [#tpu.dimension_semantics<parallel>], iteration_bounds = array<i64: 1>, scalar_prefetch = 0 : i64, scratch_operands = 0 : i64, tpu.core_type = #tpu.core_type<tc>, window_params = [{pipeline_mode = #tpu.pipeline_mode<double_buffered>, transform_indices = @transform_0, window_bounds = array<i64: 16, 128>}, {pipeline_mode = #tpu.pipeline_mode<synchronous>, transform_indices = @transform_1, window_bounds = array<i64: 128, 128>}, {pipeline_mode = #tpu.pipeline_mode<synchronous>, transform_indices = @transform_2, window_bounds = array<i64: 1, 128>}, {pipeline_mode = #tpu.pipeline_mode<synchronous>, transform_indices = @transform_3, window_bounds = array<i64: 128, 128>}, {pipeline_mode = #tpu.pipeline_mode<synchronous>, transform_indices = @transform_4, window_bounds = array<i64: 1, 128>}, {transform_indices = @transform_5, window_bounds = array<i64: 16, 128>}]} {
    %c0 = arith.constant 0 : index
    %c0_0 = arith.constant 0 : index
    %0 = vector.load %arg1[%c0, %c0_0] : memref<16x128xf32, #tpu.memory_space<vmem>>, vector<16x128xf32>
    %1 = arith.truncf %0 : vector<16x128xf32> to vector<16x128xbf16>
    %c0_1 = arith.constant 0 : index
    %c0_2 = arith.constant 0 : index
    %2 = vector.load %arg2[%c0_1, %c0_2] : memref<128x128xbf16, #tpu.memory_space<vmem>>, vector<128x128xbf16>
    %cst = arith.constant dense<0.000000e+00> : vector<16x128xf32>
    %3 = tpu.matmul %1, %2, %cst {dimension_numbers = #tpu.dot_dimension_numbers<[1], [0], [0], [1], [0, 0, 1, 1], [], []>} : vector<16x128xbf16>, vector<128x128xbf16>, vector<16x128xf32> -> vector<16x128xf32>
    %c0_3 = arith.constant 0 : index
    %c0_4 = arith.constant 0 : index
    %4 = vector.load %arg3[%c0_3, %c0_4] : memref<1x128xf32, #tpu.memory_space<vmem>>, vector<1x128xf32>
    %5 = vector.broadcast %4 : vector<1x128xf32> to vector<16x128xf32>
    %6 = arith.addf %3, %5 : vector<16x128xf32>
    %cst_5 = arith.constant 0.000000e+00 : f32
    %7 = vector.broadcast %cst_5 : f32 to vector<16x128xf32>
    %8 = arith.maximumf %6, %7 : vector<16x128xf32>
    %9 = arith.truncf %8 : vector<16x128xf32> to vector<16x128xbf16>
    %c0_6 = arith.constant 0 : index
    %c0_7 = arith.constant 0 : index
    %10 = vector.load %arg4[%c0_6, %c0_7] : memref<128x128xbf16, #tpu.memory_space<vmem>>, vector<128x128xbf16>
    %cst_8 = arith.constant dense<0.000000e+00> : vector<16x128xf32>
    %11 = tpu.matmul %9, %10, %cst_8 {dimension_numbers = #tpu.dot_dimension_numbers<[1], [0], [0], [1], [0, 0, 1, 1], [], []>} : vector<16x128xbf16>, vector<128x128xbf16>, vector<16x128xf32> -> vector<16x128xf32>
    %c0_9 = arith.constant 0 : index
    %c0_10 = arith.constant 0 : index
    %12 = vector.load %arg5[%c0_9, %c0_10] : memref<1x128xf32, #tpu.memory_space<vmem>>, vector<1x128xf32>
    %13 = vector.broadcast %12 : vector<1x128xf32> to vector<16x128xf32>
    %14 = arith.addf %11, %13 : vector<16x128xf32>
    %c0_11 = arith.constant 0 : index
    %c0_12 = arith.constant 0 : index
    %15 = vector.load %arg6[%c0_11, %c0_12] : memref<16x128xf32, #tpu.memory_space<vmem>>, vector<16x128xf32>
    tpu.vector_store %arg6[%c0_11, %c0_12], %14 {strides = array<i32>} : memref<16x128xf32, #tpu.memory_space<vmem>>, vector<16x128xf32>,
    return
  }
  func.func @transform_0(%arg0: i32) -> (i32, i32) {
    %c0_i32 = arith.constant 0 : i32
    %c0_i32_0 = arith.constant 0 : i32
    return %arg0, %c0_i32 : i32, i32
  }
  func.func @transform_1(%arg0: i32) -> (i32, i32) {
    %c0_i32 = arith.constant 0 : i32
    %c0_i32_0 = arith.constant 0 : i32
    %c0_i32_1 = arith.constant 0 : i32
    return %c0_i32, %c0_i32_0 : i32, i32
  }
  func.func @transform_2(%arg0: i32) -> (i32, i32) {
    %c0_i32 = arith.constant 0 : i32
    %c0_i32_0 = arith.constant 0 : i32
    %c0_i32_1 = arith.constant 0 : i32
    return %c0_i32, %c0_i32_0 : i32, i32
  }
  func.func @transform_3(%arg0: i32) -> (i32, i32) {
    %c0_i32 = arith.constant 0 : i32
    %c0_i32_0 = arith.constant 0 : i32
    %c0_i32_1 = arith.constant 0 : i32
    return %c0_i32, %c0_i32_0 : i32, i32
  }
  func.func @transform_4(%arg0: i32) -> (i32, i32) {
    %c0_i32 = arith.constant 0 : i32
    %c0_i32_0 = arith.constant 0 : i32
    %c0_i32_1 = arith.constant 0 : i32
    return %c0_i32, %c0_i32_0 : i32, i32
  }
  func.func @transform_5(%arg0: i32) -> (i32, i32) {
    %c0_i32 = arith.constant 0 : i32
    %c0_i32_0 = arith.constant 0 : i32
    return %arg0, %c0_i32 : i32, i32
  }
}

</mosaic_0001>

<llo_original>
// kernel: _forward.1
$region0: #{_forward.1}
  #allocation0 [shape = 'u32[]', space=smem, size = 0x4, offset = 0x4, fixed_abs, tag = 'smem constant byte address 0x4 - core index']
  #allocation1 [shape = 'u32[144,128]{1,0:T(1,128)}', space=vmem, size = 0x12000, scoped, tag = 'internal scratch']
  %s0 = inlined_call_operand.hbm [shape: f32[16,128], index: 0, kind: input, shape index: {}]
  %s1 = inlined_call_operand.hbm [shape: bf16[128,128], index: 1, kind: input, shape index: {}]
  %s2 = inlined_call_operand.vmem [shape: f32[1,128], index: 2, kind: input, shape index: {}]
  %s3 = inlined_call_operand.hbm [shape: bf16[128,128], index: 3, kind: input, shape index: {}]
  %s4 = inlined_call_operand.vmem [shape: f32[1,128], index: 4, kind: input, shape index: {}]
  %s5 = inlined_call_operand.vmem [shape: f32[16,128], index: 5, kind: output, shape index: {}]
  %s6 = sld [smem:[#allocation0]]
  $region42: #{_forward.1} parent=0
    _
  %s8 = ssub.s32 1, %s6
  %s9 = scalar_select 0, %s8, %s6
  $region1: #{_forward.1} parent=0
    #allocation2 [shape = 'u8[8192]{0}', space=vmem, size = 0x2000, scoped, tag = 'input window, operand 0, single buffered']
    #allocation3 [shape = 's32[1]{0}', space=sflag, size = 0x4, scoped, tag = 'scoped memory for _forward.1']
    #allocation4 [shape = 'u8[32768]{0}', space=vmem, size = 0x8000, scoped, tag = 'input window, operand 1, single buffered']
    #allocation5 [shape = 's32[1]{0}', space=sflag, size = 0x4, scoped, tag = 'scoped memory for _forward.1']
    #allocation6 [shape = 'u8[32768]{0}', space=vmem, size = 0x8000, scoped, tag = 'input window, operand 3, single buffered']
    %10 = vsyncpa [#allocation3], 0
    %11 = vsyncpa [#allocation5], 0
    // Predicated region
    $region2: #{_forward.1} parent=1 // pred_check
      _
    $region3: #{_forward.1} parent=1 // pred_check_branch
      %13 = sbr.rel (0) target = $region5
    $region4: #{_forward.1} parent=1 // pred_region
      %s15 = ssub.s32 256, 256
      %16 = vsyncadd [#allocation3], %s15
      %s17 = sshll.u32 [#allocation2], 4
      %s18 = int_to_ptr.vmem [resolvable:$true] %s17
      %23 = dma.hbm_to_vmem [thread:$0]  %s0, 256, %s18, [#allocation3], 128, 128, 8
    $region5: #{_forward.1} parent=1 // pred_fallthru
      _
    // Predicated region
    $region6: #{_forward.1} parent=1 // pred_check
      _
    $region7: #{_forward.1} parent=1 // pred_check_branch
      %25 = sbr.rel (0) target = $region9
    $region8: #{_forward.1} parent=1 // pred_region
      %s27 = ssub.s32 1024, 1024
      %28 = vsyncadd [#allocation5], %s27
      %s29 = sshll.u32 [#allocation4], 4
      %s30 = int_to_ptr.vmem [resolvable:$true] %s29
      %35 = dma.hbm_to_vmem [thread:$0]  %s1, 1024, %s30, [#allocation5], 64, 64, 4
    $region9: #{_forward.1} parent=1 // pred_fallthru
      _
    // Predicated region
    $region10: #{_forward.1} parent=1 // pred_check
      _
    $region11: #{_forward.1} parent=1 // pred_check_branch
      %37 = sbr.rel (0) target = $region13
    $region12: #{_forward.1} parent=1 // pred_region
      _
    $region13: #{_forward.1} parent=1 // pred_fallthru
      _
    // Predicated region
    $region14: #{_forward.1} parent=1 // pred_check
      _
    $region15: #{_forward.1} parent=1 // pred_check_branch
      %39 = sbr.rel (0) target = $region17
    $region16: #{_forward.1} parent=1 // pred_region
      %s41 = ssub.s32 1024, 1024
      %42 = vsyncadd [#allocation5], %s41
      %s43 = sshll.u32 [#allocation6], 4
      %s44 = int_to_ptr.vmem [resolvable:$true] %s43
      %49 = dma.hbm_to_vmem [thread:$0]  %s3, 1024, %s44, [#allocation5], 64, 64, 4
    $region17: #{_forward.1} parent=1 // pred_fallthru
      _
    // Predicated region
    $region18: #{_forward.1} parent=1 // pred_check
      _
    $region19: #{_forward.1} parent=1 // pred_check_branch
      %51 = sbr.rel (0) target = $region21
    $region20: #{_forward.1} parent=1 // pred_region
      _
    $region21: #{_forward.1} parent=1 // pred_fallthru
      _
    // Predicated region
    $region22: #{_forward.1} parent=1 // pred_check
      _
    $region23: #{_forward.1} parent=1 // pred_check_branch
      %53 = sbr.rel (0) target = $region25
    $region24: #{_forward.1} parent=1 // pred_region
      %54 = dma.done [#allocation3], 256
    $region25: #{_forward.1} parent=1 // pred_fallthru
      _
    // Predicated region
    $region26: #{_forward.1} parent=1 // pred_check
      _
    $region27: #{_forward.1} parent=1 // pred_check_branch
      %56 = sbr.rel (0) target = $region29
    $region28: #{_forward.1} parent=1 // pred_region
      %57 = dma.done [#allocation5], 1024
    $region29: #{_forward.1} parent=1 // pred_fallthru
      _
    // Predicated region
    $region30: #{_forward.1} parent=1 // pred_check
      _
    $region31: #{_forward.1} parent=1 // pred_check_branch
      %59 = sbr.rel (0) target = $region33
    $region32: #{_forward.1} parent=1 // pred_region
      %60 = dma.done [#allocation5], 1024
    $region33: #{_forward.1} parent=1 // pred_fallthru
      _
    %v62 = vld [vmem:[#allocation2] sm:$0xff]
    %v63 = vld [vmem:[#allocation2 + $0x8] sm:$0xff]
    %v64 = vpack.c.bf16 %v63, %v62
    %v65 = vld [vmem:[#allocation4] sm:$0xf]
    %v66 = vld [vmem:[#allocation4 + $0x4] sm:$0xf]
    %v67 = vld [vmem:[#allocation4 + $0x8] sm:$0xf]
    %v68 = vld [vmem:[#allocation4 + $0xc] sm:$0xf]
    %v69 = vld [vmem:[#allocation4 + $0x10] sm:$0xf]
    %v70 = vld [vmem:[#allocation4 + $0x14] sm:$0xf]
    %v71 = vld [vmem:[#allocation4 + $0x18] sm:$0xf]
    %v72 = vld [vmem:[#allocation4 + $0x1c] sm:$0xf]
    %v73 = vld [vmem:[#allocation4 + $0x20] sm:$0xf]
    %v74 = vld [vmem:[#allocation4 + $0x24] sm:$0xf]
    %v75 = vld [vmem:[#allocation4 + $0x28] sm:$0xf]
    %v76 = vld [vmem:[#allocation4 + $0x2c] sm:$0xf]
    %v77 = vld [vmem:[#allocation4 + $0x30] sm:$0xf]
    %v78 = vld [vmem:[#allocation4 + $0x34] sm:$0xf]
    %v79 = vld [vmem:[#allocation4 + $0x38] sm:$0xf]
    %v80 = vld [vmem:[#allocation4 + $0x3c] sm:$0xf]
    %v81 = vld [vmem:[%s2] sm:$0x1]
    %v83 = vlaneseq
    %v84 = vshrl.u32 %v83, 7
    %v85 = vsub.s32 0, %v84
    %v86 = vrot.slane %v81, %v85
    %v104 = vunpack.c.l.b16 %v65
    %v105 = vunpack.c.l.b16 %v66
    %v106 = vunpack.c.l.b16 %v67
    %v107 = vunpack.c.l.b16 %v68
    %v108 = vunpack.c.l.b16 %v69
    %v109 = vunpack.c.l.b16 %v70
    %v110 = vunpack.c.l.b16 %v71
    %v111 = vunpack.c.l.b16 %v72
    %v112 = vunpack.c.l.b16 %v73
    %v113 = vunpack.c.l.b16 %v74
    %v114 = vunpack.c.l.b16 %v75
    %v115 = vunpack.c.l.b16 %v76
    %v116 = vunpack.c.l.b16 %v77
    %v117 = vunpack.c.l.b16 %v78
    %v118 = vunpack.c.l.b16 %v79
    %v119 = vunpack.c.l.b16 %v80
    %v120 = vpack.c.b16 %v105, %v104
    %v121 = vpack.c.b16 %v107, %v106
    %v122 = vpack.c.b16 %v109, %v108
    %v123 = vpack.c.b16 %v111, %v110
    %v124 = vpack.c.b16 %v113, %v112
    %v125 = vpack.c.b16 %v115, %v114
    %v126 = vpack.c.b16 %v117, %v116
    %v127 = vpack.c.b16 %v119, %v118
    %136 = vmatprep.subr.bf16.mxu0 0
    %137 = vmatpush1.bf16.msra.mxu0 %v127
    %138 = vmatprep.subr.bf16.mxu0 0
    %139 = vmatpush1.bf16.msra.mxu0 %v126
    %140 = vmatprep.subr.bf16.mxu0 0
    %141 = vmatpush1.bf16.msra.mxu0 %v125
    %142 = vmatprep.subr.bf16.mxu0 0
    %143 = vmatpush1.bf16.msra.mxu0 %v124
    %144 = vmatprep.subr.bf16.mxu0 0
    %145 = vmatpush1.bf16.msra.mxu0 %v123
    %146 = vmatprep.subr.bf16.mxu0 0
    %147 = vmatpush1.bf16.msra.mxu0 %v122
    %148 = vmatprep.subr.bf16.mxu0 0
    %149 = vmatpush1.bf16.msra.mxu0 %v121
    %150 = vmatprep.subr.bf16.mxu0 0
    %151 = vmatpush1.bf16.msra.mxu0 %v120
    %152 = vmatprep.subr.bf16.mxu0 0
    %153 = vmatpush2.bf16.msra.mxu0 0
    %154 = vmatprep.subr.bf16.mxu0 0
    %155 = vmatpush2.bf16.msra.mxu0 0
    %156 = vmatprep.subr.bf16.mxu0 0
    %157 = vmatpush2.bf16.msra.mxu0 0
    %158 = vmatprep.subr.bf16.mxu0 0
    %159 = vmatpush2.bf16.msra.mxu0 0
    %160 = vmatprep.subr.bf16.mxu0 0
    %161 = vmatpush2.bf16.msra.mxu0 0
    %162 = vmatprep.subr.bf16.mxu0 0
    %163 = vmatpush2.bf16.msra.mxu0 0
    %164 = vmatprep.subr.bf16.mxu0 0
    %165 = vmatpush2.bf16.msra.mxu0 0
    %166 = vmatprep.subr.bf16.mxu0 0
    %167 = vmatpush2.bf16.msra.mxu0 0
    %168 = vmatprep.mubr.bf16.mxu0 0
    %169 = vmatmul.mubr.bf16.gmra.mxu0 %v64
    %v170 = vpop.f32.mrf.mxu0
    %v171 = vadd.f32 %v86, %v170
    %v172 = vpop.f32.mrf.mxu0
    %v173 = vpop.f32.mrf.mxu0
    %v174 = vadd.f32 %v86, %v173
    %v175 = vpop.f32.mrf.mxu0
    %176 = vdwg.mxu0
    %v177 = vmax.f32 %v171, 0.0
    %v178 = vmax.f32 %v174, 0.0
    %v179 = vpack.c.bf16 %v178, %v177
    %v180 = vld [vmem:[#allocation6] sm:$0xf]
    %v181 = vld [vmem:[#allocation6 + $0x4] sm:$0xf]
    %v182 = vld [vmem:[#allocation6 + $0x8] sm:$0xf]
    %v183 = vld [vmem:[#allocation6 + $0xc] sm:$0xf]
    %v184 = vld [vmem:[#allocation6 + $0x10] sm:$0xf]
    %v185 = vld [vmem:[#allocation6 + $0x14] sm:$0xf]
    %v186 = vld [vmem:[#allocation6 + $0x18] sm:$0xf]
    %v187 = vld [vmem:[#allocation6 + $0x1c] sm:$0xf]
    %v188 = vld [vmem:[#allocation6 + $0x20] sm:$0xf]
    %v189 = vld [vmem:[#allocation6 + $0x24] sm:$0xf]
    %v190 = vld [vmem:[#allocation6 + $0x28] sm:$0xf]
    %v191 = vld [vmem:[#allocation6 + $0x2c] sm:$0xf]
    %v192 = vld [vmem:[#allocation6 + $0x30] sm:$0xf]
    %v193 = vld [vmem:[#allocation6 + $0x34] sm:$0xf]
    %v194 = vld [vmem:[#allocation6 + $0x38] sm:$0xf]
    %v195 = vld [vmem:[#allocation6 + $0x3c] sm:$0xf]
    %v196 = vld [vmem:[%s4] sm:$0x1]
    %v198 = vlaneseq
    %v199 = vshrl.u32 %v198, 7
    %v200 = vsub.s32 0, %v199
    %v201 = vrot.slane %v196, %v200
    %v219 = vunpack.c.l.b16 %v180
    %v220 = vunpack.c.l.b16 %v181
    %v221 = vunpack.c.l.b16 %v182
    %v222 = vunpack.c.l.b16 %v183
    %v223 = vunpack.c.l.b16 %v184
    %v224 = vunpack.c.l.b16 %v185
    %v225 = vunpack.c.l.b16 %v186
    %v226 = vunpack.c.l.b16 %v187
    %v227 = vunpack.c.l.b16 %v188
    %v228 = vunpack.c.l.b16 %v189
    %v229 = vunpack.c.l.b16 %v190
    %v230 = vunpack.c.l.b16 %v191
    %v231 = vunpack.c.l.b16 %v192
    %v232 = vunpack.c.l.b16 %v193
    %v233 = vunpack.c.l.b16 %v194
    %v234 = vunpack.c.l.b16 %v195
    %v235 = vpack.c.b16 %v220, %v219
    %v236 = vpack.c.b16 %v222, %v221
    %v237 = vpack.c.b16 %v224, %v223
    %v238 = vpack.c.b16 %v226, %v225
    %v239 = vpack.c.b16 %v228, %v227
    %v240 = vpack.c.b16 %v230, %v229
    %v241 = vpack.c.b16 %v232, %v231
    %v242 = vpack.c.b16 %v234, %v233
    %251 = vmatprep.subr.bf16.mxu0 0
    %252 = vmatpush1.bf16.msra.mxu0 %v242
    %253 = vmatprep.subr.bf16.mxu0 0
    %254 = vmatpush1.bf16.msra.mxu0 %v241
    %255 = vmatprep.subr.bf16.mxu0 0
    %256 = vmatpush1.bf16.msra.mxu0 %v240
    %257 = vmatprep.subr.bf16.mxu0 0
    %258 = vmatpush1.bf16.msra.mxu0 %v239
    %259 = vmatprep.subr.bf16.mxu0 0
    %260 = vmatpush1.bf16.msra.mxu0 %v238
    %261 = vmatprep.subr.bf16.mxu0 0
    %262 = vmatpush1.bf16.msra.mxu0 %v237
    %263 = vmatprep.subr.bf16.mxu0 0
    %264 = vmatpush1.bf16.msra.mxu0 %v236
    %265 = vmatprep.subr.bf16.mxu0 0
    %266 = vmatpush1.bf16.msra.mxu0 %v235
    %267 = vmatprep.subr.bf16.mxu0 0
    %268 = vmatpush2.bf16.msra.mxu0 0
    %269 = vmatprep.subr.bf16.mxu0 0
    %270 = vmatpush2.bf16.msra.mxu0 0
    %271 = vmatprep.subr.bf16.mxu0 0
    %272 = vmatpush2.bf16.msra.mxu0 0
    %273 = vmatprep.subr.bf16.mxu0 0
    %274 = vmatpush2.bf16.msra.mxu0 0
    %275 = vmatprep.subr.bf16.mxu0 0
    %276 = vmatpush2.bf16.msra.mxu0 0
    %277 = vmatprep.subr.bf16.mxu0 0
    %278 = vmatpush2.bf16.msra.mxu0 0
    %279 = vmatprep.subr.bf16.mxu0 0
    %280 = vmatpush2.bf16.msra.mxu0 0
    %281 = vmatprep.subr.bf16.mxu0 0
    %282 = vmatpush2.bf16.msra.mxu0 0
    %283 = vmatprep.mubr.bf16.mxu0 0
    %284 = vmatmul.mubr.bf16.gmra.mxu0 %v179
    %v285 = vpop.f32.mrf.mxu0
    %v286 = vadd.f32 %v201, %v285
    %v287 = vpop.f32.mrf.mxu0
    %v288 = vpop.f32.mrf.mxu0
    %v289 = vadd.f32 %v201, %v288
    %v290 = vpop.f32.mrf.mxu0
    %291 = vdwg.mxu0
    %292 = vst [vmem:[%s5] sm:$0xff] %v286
    %293 = vst [vmem:[%s5 + $0x8] sm:$0xff] %v289
    // Predicated region
    $region34: #{_forward.1} parent=1 // pred_check
      _
    $region35: #{_forward.1} parent=1 // pred_check_branch
      %295 = sbr.rel (0) target = $region37
    $region36: #{_forward.1} parent=1 // pred_region
      _
    $region37: #{_forward.1} parent=1 // pred_fallthru
      _
    // Predicated region
    $region38: #{_forward.1} parent=1 // pred_check
      _
    $region39: #{_forward.1} parent=1 // pred_check_branch
      %297 = sbr.rel (0) target = $region41
    $region40: #{_forward.1} parent=1 // pred_region
      _
    $region41: #{_forward.1} parent=1 // pred_fallthru
      _
    %298 = vsyncpa [#allocation3], 1
    %299 = vsyncpa [#allocation5], 1

</llo_original>
